<compile_context>
chip_gen: v7x
topology: tpu7x:2x2x1
jax: 0.10.0
libtpu: 0.0.40
codegen_flags: <defaults>
</compile_context>

<pallas_src>
import functools

import jax
import jax.numpy as jnp
from jax.experimental import pallas as pl
from jax.experimental.pallas import tpu as pltpu


def _cdiv(a, b):
    return (a + b - 1) // b


def _round_up(x, m):
    return ((x + m - 1) // m) * m


# --------------------------------------------------------------------------- #
# Kernel: one (tn, to) tile of  y = SiLU(x @ w + b), K tiled on the last grid
# axis with an f32 accumulator scratch.
# --------------------------------------------------------------------------- #
def _fused_matmul_bias_silu_kernel(x_ref, w_ref, b_ref, o_ref, acc_ref, *,
                                   compute_dtype):
    k = pl.program_id(2)

    @pl.when(k == 0)
    def _():
        acc_ref[...] = jnp.zeros_like(acc_ref)

    # Cast activations (and weight, no-op if already bf16) on the VPU; f32
    # accumulation on the MXU.  Keeping x f32 in HBM avoids a host cast pass.
    acc_ref[...] += jnp.dot(x_ref[...].astype(compute_dtype),
                            w_ref[...].astype(compute_dtype),
                            preferred_element_type=jnp.float32)

    @pl.when(k == pl.num_programs(2) - 1)
    def _():
        y = acc_ref[...] + b_ref[...].astype(jnp.float32)
        # SiLU via exact identity: sigmoid(y) = 0.5*(1 + tanh(y/2)).
        # Single EUP op (tanh); muls/adds ride the 4-wide VPU.
        y = y * (0.5 * (1.0 + jnp.tanh(0.5 * y)))
        o_ref[...] = y.astype(o_ref.dtype)


# --------------------------------------------------------------------------- #
# Host-side parameter fold (run ONCE per parameter set, reuse across calls).
# --------------------------------------------------------------------------- #
def fold_signal_encoder_params(params, *, compute_dtype=jnp.bfloat16):
    """Fold the pointwise Conv1d into the FC layer.

    W_eff[c*S+s, o] = sum_co wc[co, c] * wf_t[co*S+s, o]
    b_eff[o]        = bf[o] + sum_co bc[co] * sum_s wf_t[co*S+s, o]
    """
    wc, bc, wf_t, bf = params                      # (8,C), (8,), (8*S, O), (O,)
    n_cout, C = wc.shape
    KO, O = wf_t.shape
    S = KO // n_cout
    wf3 = wf_t.reshape(n_cout, S, O).astype(jnp.float32)
    w_eff = jnp.einsum('xc,xso->cso', wc.astype(jnp.float32),
                       wf3).reshape(C * S, O)
    b_eff = bf.astype(jnp.float32) + jnp.einsum(
        'x,xso->o', bc.astype(jnp.float32), wf3)
    return w_eff.astype(compute_dtype), b_eff.reshape(1, O)


# --------------------------------------------------------------------------- #
# Forward wrapper
# --------------------------------------------------------------------------- #
_VMEM_TILE_BUDGET = 36 * 1024 * 1024   # tile-selection target; safe on v7x (64 MiB)


def _vmem_footprint(tn, to, tk, act_bytes, w_bytes, out_bytes):
    # double-buffered inputs + bias + double-buffered output + f32 acc scratch
    return (2 * (tn * tk * act_bytes + tk * to * w_bytes + to * 4)
            + 2 * tn * to * out_bytes + tn * to * 4)


def signal_encoder_forward(x, folded_params, *, tn=None, to=None, tk=None,
                           out_dtype=None, compute_dtype=jnp.bfloat16):
    """x: (B, frames, frame_step, signal_data) -> (B, frames, output_size)."""
    w_eff, b_eff = folded_params
    B, F, C, S = x.shape
    N, K = B * F, C * S
    Kw, O = w_eff.shape
    assert Kw == K, (Kw, K)
    if out_dtype is None:
        out_dtype = x.dtype

    act_bytes = jnp.dtype(x.dtype).itemsize
    w_bytes = jnp.dtype(w_eff.dtype).itemsize
    out_bytes = jnp.dtype(out_dtype).itemsize

    # ---- Tile selection ---------------------------------------------------
    tn_auto = tn is None
    if tn_auto:
        # Balanced row tiles (multiple of 8, <= 512): tail waste < 1 tile.
        tn = min(512, _round_up(_cdiv(N, _cdiv(N, 512)), 8))
    if to is None:
        # 256-aligned column tiles keep the 2x256x256 MXU (v6e/v7x) full.
        align = 256 if O > 128 else 128
        to = min(512, _round_up(O, align))
    # v7x megacore: make sure both TensorCores get work for small problems.
    if tn_auto and _cdiv(N, tn) * _cdiv(O, to) < 2 and N > 8:
        tn = min(tn, _round_up(_cdiv(N, 2), 8))
    assert tn % 8 == 0, "row tile must be a multiple of 8 sublanes"
    assert to % 128 == 0, "col tile must be a multiple of 128 lanes"

    # Contraction: full K resident if it fits the VMEM budget, else tile K.
    if tk is None:
        if _vmem_footprint(tn, to, K, act_bytes, w_bytes,
                           out_bytes) <= _VMEM_TILE_BUDGET:
            tk = K
        else:
            fixed = 2 * to * 4 + 2 * tn * to * out_bytes + tn * to * 4
            tk = (_VMEM_TILE_BUDGET - fixed) // (
                2 * (tn * act_bytes + to * w_bytes))
            tk = max(128, (tk // 128) * 128)
    tk = min(tk, K)
    assert tk == K or tk % 128 == 0, "K tile must be a multiple of 128 lanes"

    K_pad = K if tk == K else _round_up(K, tk)
    nk = K_pad // tk

    # ---- Host-side prep (no activation cast/pad in the common nk == 1 case).
    x_flat = x.reshape(N, K)        # lane-dense, channel-major (matches .view)
    w = w_eff
    if K_pad != K:                  # only in the huge-K (K-tiled) regime
        x_flat = jnp.pad(x_flat, ((0, 0), (0, K_pad - K)))
        w = jnp.pad(w, ((0, K_pad - K), (0, 0)))

    n_i, n_j = _cdiv(N, tn), _cdiv(O, to)

    # ---- Loop order: keep the larger operand resident ----------------------
    rows_outer_bytes = N * K * act_bytes + n_i * K * O * w_bytes
    cols_outer_bytes = n_j * N * K * act_bytes + K * O * w_bytes
    rows_outer = rows_outer_bytes <= cols_outer_bytes

    if rows_outer:
        grid = (n_i, n_j, nk)
        x_spec = pl.BlockSpec((tn, tk), lambda i, j, k: (i, k))
        w_spec = pl.BlockSpec((tk, to), lambda i, j, k: (k, j))
        b_spec = pl.BlockSpec((1, to), lambda i, j, k: (0, j))
        o_spec = pl.BlockSpec((tn, to), lambda i, j, k: (i, j))
    else:
        grid = (n_j, n_i, nk)
        x_spec = pl.BlockSpec((tn, tk), lambda j, i, k: (i, k))
        w_spec = pl.BlockSpec((tk, to), lambda j, i, k: (k, j))
        b_spec = pl.BlockSpec((1, to), lambda j, i, k: (0, j))
        o_spec = pl.BlockSpec((tn, to), lambda j, i, k: (i, j))

    fp = _vmem_footprint(tn, to, tk, act_bytes, w_bytes, out_bytes)
    vmem_limit = int(min(max(fp + (8 << 20), 32 << 20), 48 << 20))

    out = pl.pallas_call(
        functools.partial(_fused_matmul_bias_silu_kernel,
                          compute_dtype=compute_dtype),
        out_shape=jax.ShapeDtypeStruct((N, O), out_dtype),
        grid_spec=pltpu.PrefetchScalarGridSpec(
            num_scalar_prefetch=0,
            grid=grid,
            in_specs=[x_spec, w_spec, b_spec],
            out_specs=o_spec,
            scratch_shapes=[pltpu.VMEM((tn, to), jnp.float32)],
        ),
        compiler_params=pltpu.CompilerParams(
            dimension_semantics=("parallel", "parallel", "arbitrary"),
            vmem_limit_bytes=vmem_limit),
    )(x_flat, w, b_eff)

    return out.reshape(B, F, O)


# --------------------------------------------------------------------------- #
# Parameter init + pure-JAX reference (mirrors the PyTorch module exactly)
# --------------------------------------------------------------------------- #
def init_params(key, *, input_size, frame_step, output_size, n_cout=8):
    """PyTorch-style uniform(+-1/sqrt(fan_in)) init."""
    k1, k2, k3, k4 = jax.random.split(key, 4)
    bc_bound = 1.0 / jnp.sqrt(jnp.float32(frame_step * 1))        # conv fan_in
    bf_bound = 1.0 / jnp.sqrt(jnp.float32(n_cout * input_size))   # fc fan_in
    wc = jax.random.uniform(k1, (n_cout, frame_step), jnp.float32,
                            -bc_bound, bc_bound)                  # (8, C), k=1
    bc = jax.random.uniform(k2, (n_cout,), jnp.float32, -bc_bound, bc_bound)
    wf = jax.random.uniform(k3, (output_size, n_cout * input_size), jnp.float32,
                            -bf_bound, bf_bound)                  # torch (O, 8*S)
    bf = jax.random.uniform(k4, (output_size,), jnp.float32, -bf_bound, bf_bound)
    return wc, bc, wf.T, bf                                       # wf_t: (8*S, O)


def signal_encoder_ref(x, params):
    wc, bc, wf_t, bf = params
    B, F, C, S = x.shape
    xr = x.reshape(B * F, C, S)
    h = jnp.einsum('oc,ncs->nos', wc, xr) + bc[None, :, None]     # Conv1d, k=1
    hf = h.reshape(B * F, -1)                                     # channel-major
    y = hf @ wf_t + bf[None, :]                                   # Linear
    y = y * jax.nn.sigmoid(y)                                     # SiLU
    return y.reshape(B, F, -1)


if __name__ == "__main__":
    # Small shapes consistent with the module (input_size=S, frame_step=C,
    # output_size=O).  N=12 / O=192 exercise the boundary-masked tiles.
    B, F, C, S, O = 2, 6, 2, 128, 192

    key = jax.random.PRNGKey(0)
    kx, kp = jax.random.split(key)
    x = jax.random.normal(kx, (B, F, C, S), dtype=jnp.float32)
    params = init_params(kp, input_size=S, frame_step=C, output_size=O)
    folded = fold_signal_encoder_params(params)       # fold once, reuse below
    ref = signal_encoder_ref(x, params)

    # 1) Default tiling: single K tile, weight-or-activation residency chosen
    #    automatically, masked row/col boundaries, v7x 2-tile row split.
    out = jax.block_until_ready(signal_encoder_forward(x, folded))
    assert out.shape == (B, F, O), out.shape
    assert jnp.allclose(out, ref, atol=3e-2, rtol=3e-2), float(
        jnp.max(jnp.abs(out - ref)))

    # 2) Forced K-tiled accumulator path (nk > 1), 128-wide column tiles,
    #    bf16 output writeback.
    out2 = jax.block_until_ready(
        signal_encoder_forward(x, folded, tn=16, to=128, tk=128,
                               out_dtype=jnp.bfloat16))
    assert out2.shape == (B, F, O)
    assert jnp.allclose(out2.astype(jnp.float32), ref, atol=5e-2, rtol=5e-2)

    # 3) K not a multiple of tk -> zero-padded contraction path.
    S3 = 96
    x3 = jax.random.normal(kx, (B, F, C, S3), dtype=jnp.float32)
    params3 = init_params(kp, input_size=S3, frame_step=C, output_size=O)
    folded3 = fold_signal_encoder_params(params3)
    out3 = jax.block_until_ready(signal_encoder_forward(x3, folded3, tk=128))
    assert jnp.allclose(out3, signal_encoder_ref(x3, params3),
                        atol=3e-2, rtol=3e-2)

    print("KERNEL_OK")
</pallas_src>

<mosaic_0001>
module attributes {stable_mosaic.version = 11 : i64} {
  func.func @_fused_matmul_bias_silu_kernel(%arg0: i32, %arg1: i32, %arg2: i32, %arg3: memref<8x256xf32, #tpu.memory_space<vmem>>, %arg4: memref<256x256xbf16, #tpu.memory_space<vmem>>, %arg5: memref<1x256xf32, #tpu.memory_space<vmem>>, %arg6: memref<8x256xf32, #tpu.memory_space<vmem>>, %arg7: memref<8x256xf32, #tpu.memory_space<vmem>>) attributes {dimension_semantics = [#tpu.dimension_semantics<parallel>, #tpu.dimension_semantics<parallel>, #tpu.dimension_semantics<arbitrary>], iteration_bounds = array<i64: 1, 2, 1>, scalar_prefetch = 0 : i64, scratch_operands = 1 : i64, tpu.core_type = #tpu.core_type<tc>, window_params = [{transform_indices = @transform_0, window_bounds = array<i64: 8, 256>}, {transform_indices = @transform_1, window_bounds = array<i64: 256, 256>}, {transform_indices = @transform_2, window_bounds = array<i64: 1, 256>}, {transform_indices = @transform_3, window_bounds = array<i64: 8, 256>}]} {
    %c0_i32 = arith.constant 0 : i32
    %0 = arith.cmpi eq, %arg2, %c0_i32 : i32
    %1 = arith.extui %0 : i1 to i32
    %c0_i32_0 = arith.constant 0 : i32
    %2 = arith.cmpi ne, %1, %c0_i32_0 : i32
    scf.if %2 {
      %cst_10 = arith.constant 0.000000e+00 : f32
      %13 = vector.broadcast %cst_10 : f32 to vector<8x256xf32>
      %c0_11 = arith.constant 0 : index
      %c0_12 = arith.constant 0 : index
      %14 = vector.load %arg7[%c0_11, %c0_12] : memref<8x256xf32, #tpu.memory_space<vmem>>, vector<8x256xf32>
      tpu.vector_store %arg7[%c0_11, %c0_12], %13 {strides = array<i32>} : memref<8x256xf32, #tpu.memory_space<vmem>>, vector<8x256xf32>,
    } else {
    }
    %c0 = arith.constant 0 : index
    %c0_1 = arith.constant 0 : index
    %3 = vector.load %arg7[%c0, %c0_1] : memref<8x256xf32, #tpu.memory_space<vmem>>, vector<8x256xf32>
    %c0_2 = arith.constant 0 : index
    %c0_3 = arith.constant 0 : index
    %4 = vector.load %arg3[%c0_2, %c0_3] : memref<8x256xf32, #tpu.memory_space<vmem>>, vector<8x256xf32>
    %5 = arith.truncf %4 : vector<8x256xf32> to vector<8x256xbf16>
    %c0_4 = arith.constant 0 : index
    %c0_5 = arith.constant 0 : index
    %6 = vector.load %arg4[%c0_4, %c0_5] : memref<256x256xbf16, #tpu.memory_space<vmem>>, vector<256x256xbf16>
    %cst = arith.constant dense<0.000000e+00> : vector<8x256xf32>
    %7 = tpu.matmul %5, %6, %cst {dimension_numbers = #tpu.dot_dimension_numbers<[1], [0], [0], [1], [0, 0, 1, 1], [], []>} : vector<8x256xbf16>, vector<256x256xbf16>, vector<8x256xf32> -> vector<8x256xf32>
    %8 = arith.addf %3, %7 : vector<8x256xf32>
    %c0_6 = arith.constant 0 : index
    %c0_7 = arith.constant 0 : index
    %9 = vector.load %arg7[%c0_6, %c0_7] : memref<8x256xf32, #tpu.memory_space<vmem>>, vector<8x256xf32>
    tpu.vector_store %arg7[%c0_6, %c0_7], %8 {strides = array<i32>} : memref<8x256xf32, #tpu.memory_space<vmem>>, vector<8x256xf32>,
    %c0_i32_8 = arith.constant 0 : i32
    %10 = arith.cmpi eq, %arg2, %c0_i32_8 : i32
    %11 = arith.extui %10 : i1 to i32
    %c0_i32_9 = arith.constant 0 : i32
    %12 = arith.cmpi ne, %11, %c0_i32_9 : i32
    scf.if %12 {
      %c0_10 = arith.constant 0 : index
      %c0_11 = arith.constant 0 : index
      %13 = vector.load %arg7[%c0_10, %c0_11] : memref<8x256xf32, #tpu.memory_space<vmem>>, vector<8x256xf32>
      %c0_12 = arith.constant 0 : index
      %c0_13 = arith.constant 0 : index
      %14 = vector.load %arg5[%c0_12, %c0_13] : memref<1x256xf32, #tpu.memory_space<vmem>>, vector<1x256xf32>
      %15 = vector.broadcast %14 : vector<1x256xf32> to vector<8x256xf32>
      %16 = arith.addf %13, %15 : vector<8x256xf32>
      %cst_14 = arith.constant 5.000000e-01 : f32
      %17 = vector.broadcast %cst_14 : f32 to vector<8x256xf32>
      %18 = arith.mulf %17, %16 : vector<8x256xf32>
      %19 = math.tanh %18 : vector<8x256xf32>
      %cst_15 = arith.constant 1.000000e+00 : f32
      %20 = vector.broadcast %cst_15 : f32 to vector<8x256xf32>
      %21 = arith.addf %20, %19 : vector<8x256xf32>
      %cst_16 = arith.constant 5.000000e-01 : f32
      %22 = vector.broadcast %cst_16 : f32 to vector<8x256xf32>
      %23 = arith.mulf %22, %21 : vector<8x256xf32>
      %24 = arith.mulf %16, %23 : vector<8x256xf32>
      %c0_17 = arith.constant 0 : index
      %c0_18 = arith.constant 0 : index
      %25 = vector.load %arg6[%c0_17, %c0_18] : memref<8x256xf32, #tpu.memory_space<vmem>>, vector<8x256xf32>
      tpu.vector_store %arg6[%c0_17, %c0_18], %24 {strides = array<i32>} : memref<8x256xf32, #tpu.memory_space<vmem>>, vector<8x256xf32>,
    } else {
    }
    return
  }
  func.func @transform_0(%arg0: i32, %arg1: i32, %arg2: i32) -> (i32, i32) {
    %c0_i32 = arith.constant 0 : i32
    return %arg1, %arg2 : i32, i32
  }
  func.func @transform_1(%arg0: i32, %arg1: i32, %arg2: i32) -> (i32, i32) {
    %c0_i32 = arith.constant 0 : i32
    return %arg2, %arg0 : i32, i32
  }
  func.func @transform_2(%arg0: i32, %arg1: i32, %arg2: i32) -> (i32, i32) {
    %c0_i32 = arith.constant 0 : i32
    %c0_i32_0 = arith.constant 0 : i32
    return %c0_i32, %arg0 : i32, i32
  }
  func.func @transform_3(%arg0: i32, %arg1: i32, %arg2: i32) -> (i32, i32) {
    %c0_i32 = arith.constant 0 : i32
    return %arg1, %arg0 : i32, i32
  }
}

</mosaic_0001>

<llo_original>
// kernel: tpu_custom_call.1
$region0: #{tpu_custom_call.1}
  #allocation0 [shape = 'u32[]', space=smem, size = 0x4, offset = 0x4, fixed_abs, tag = 'smem constant byte address 0x4 - core index']
  #allocation1 [shape = 'u32[144,128]{1,0:T(1,128)}', space=vmem, size = 0x12000, scoped, tag = 'internal scratch']
  #allocation2 [shape = 'f32[8,256]{1,0:T(8,128)}', space=vmem, size = 0x2000, scoped, tag = 'scratch operand']
  %s0 = inlined_call_operand.vmem [shape: f32[12,256], index: 0, kind: input, shape index: {}]
  %s1 = inlined_call_operand.vmem [shape: bf16[256,192], index: 1, kind: input, shape index: {}]
  %s2 = inlined_call_operand.vmem [shape: f32[1,192], index: 2, kind: input, shape index: {}]
  %s3 = inlined_call_operand.hbm [shape: f32[12,192], index: 3, kind: output, shape index: {}]
  %s4 = sld [smem:[#allocation0]]
  $region53: #{tpu_custom_call.1} parent=0
    _
  %s6 = ssub.s32 1, %s4
  %s7 = scalar_select 0, %s6, %s4
  $region1: #{tpu_custom_call.1} parent=0
    #allocation3 [shape = 'u8[16384]{0}', space=vmem, size = 0x4000, scoped, tag = 'output window, operand 0']
    #allocation4 [shape = 's32[2]{0}', space=sflag, size = 0x8, scoped, tag = 'scoped memory for tpu_custom_call.1']
    %8 = vsyncpa [#allocation4], 0
    %s9 = scalar_lea.sflag [#allocation4], 1
    %10 = vsyncpa %s9, 0
    loop: start=0, step=1, limit=4
    $region2: #{tpu_custom_call.1} parent=1 // loop_pre_header
      _
    $region3: #{tpu_custom_call.1} parent=1 // loop_header
      %s12 = sphi 0, %s16
      %p13 = scmp.ge.s32.totalorder %s12, 4
      %s19 = sphi 0, %s38
      %s20 = sphi 0, %s34
      %s21 = sphi 0, %s30
      %s22 = sphi 0, %s19
      %s23 = sphi 0, %s20
      %s24 = sphi 0, %s21
      %s25 = sphi 0, %s22
      %s26 = sphi 0, %s23
      %s27 = sphi 0, %s24
      %s43 = sphi 0, %s45
      %s46 = sphi 0, %s43
      %s47 = sphi 0, %s46
      %s63 = sphi 0, %s47
      %s71 = sphi 0, %s73
      %s74 = sphi 0, %s71
      %s75 = sphi 0, %s74
      %s91 = sphi 0, %s75
      %s97 = sphi 0, %s99
      %s100 = sphi 0, %s97
      %s101 = sphi 0, %s100
      %s117 = sphi 0, %s101
      %s125 = sphi 0, %s127
      %s128 = sphi 0, %s125
      %s129 = sphi 0, %s128
      %s145 = sphi 0, %s129
    $region4: #{tpu_custom_call.1} parent=1 // loop_header_branch
      %15 = sbr.rel (%p13) target = $region8
    $region5: #{tpu_custom_call.1} parent=1 // loop_body
      %s17 = ssub.s32 %s12, 1
      %s18 = ssub.s32 %s12, 2
      %s28 = sadd.s32 1, %s21
      %p29 = scmp.ge.s32.totalorder %s28, 1
      %s30 = scalar_select %p29, 0, %s28
      %s31 = sadd.s32 1, %s20
      %s32 = scalar_select %p29, %s31, %s20
      %p33 = scmp.ge.s32.totalorder %s32, 2
      %s34 = scalar_select %p33, 0, %s32
      %s35 = sadd.s32 1, %s19
      %s36 = scalar_select %p33, %s35, %s19
      %p37 = scmp.ge.s32.totalorder %s36, 1
      %s38 = scalar_select %p37, 0, %s36
      %s39 = ssub.s32 %s20, %s34
      %s40 = ssub.s32 %s21, %s30
      %s41 = sor.u32 %s39, %s40
      %p42 = scmp.eq.s32.totalorder %s41, 0
      %s44 = sadd.s32 %s43, 1
      %s45 = scalar_select %p42, %s43, %s44
      %p48 = pneg %p42
      %p49 = scmp.eq.s32.totalorder %s12, 1
      %p50 = por %p48, %p49
      %p51 = scmp.ne.s32.totalorder %s43, %s46
      %p52 = scmp.eq.s32.totalorder %s12, 0
      %p53 = por %p51, %p52
      %p54 = scmp.ne.s32.totalorder %s43, %s46
      %p55 = scmp.eq.s32.totalorder %s17, 1
      %p56 = por %p54, %p55
      %p57 = scmp.ne.s32.totalorder %s46, %s47
      %p58 = scmp.eq.s32.totalorder %s17, 0
      %p59 = por %p57, %p58
      %p60 = scmp.ne.s32.totalorder %s46, %s47
      %p61 = scmp.eq.s32.totalorder %s18, 1
      %p62 = por %p60, %p61
      %p64 = scmp.ne.s32.totalorder %s47, %s63
      %p65 = scmp.eq.s32.totalorder %s18, 0
      %p66 = por %p64, %p65
      %s67 = ssub.s32 %s21, %s30
      %s68 = ssub.s32 %s19, %s38
      %s69 = sor.u32 %s67, %s68
      %p70 = scmp.eq.s32.totalorder %s69, 0
      %s72 = sadd.s32 %s71, 1
      %s73 = scalar_select %p70, %s71, %s72
      %p76 = pneg %p70
      %p77 = scmp.eq.s32.totalorder %s12, 1
      %p78 = por %p76, %p77
      %p79 = scmp.ne.s32.totalorder %s71, %s74
      %p80 = scmp.eq.s32.totalorder %s12, 0
      %p81 = por %p79, %p80
      %p82 = scmp.ne.s32.totalorder %s71, %s74
      %p83 = scmp.eq.s32.totalorder %s17, 1
      %p84 = por %p82, %p83
      %p85 = scmp.ne.s32.totalorder %s74, %s75
      %p86 = scmp.eq.s32.totalorder %s17, 0
      %p87 = por %p85, %p86
      %p88 = scmp.ne.s32.totalorder %s74, %s75
      %p89 = scmp.eq.s32.totalorder %s18, 1
      %p90 = por %p88, %p89
      %p92 = scmp.ne.s32.totalorder %s75, %s91
      %p93 = scmp.eq.s32.totalorder %s18, 0
      %p94 = por %p92, %p93
      %s95 = ssub.s32 %s19, %s38
      %p96 = scmp.eq.s32.totalorder %s95, 0
      %s98 = sadd.s32 %s97, 1
      %s99 = scalar_select %p96, %s97, %s98
      %p102 = pneg %p96
      %p103 = scmp.eq.s32.totalorder %s12, 1
      %p104 = por %p102, %p103
      %p105 = scmp.ne.s32.totalorder %s97, %s100
      %p106 = scmp.eq.s32.totalorder %s12, 0
      %p107 = por %p105, %p106
      %p108 = scmp.ne.s32.totalorder %s97, %s100
      %p109 = scmp.eq.s32.totalorder %s17, 1
      %p110 = por %p108, %p109
      %p111 = scmp.ne.s32.totalorder %s100, %s101
      %p112 = scmp.eq.s32.totalorder %s17, 0
      %p113 = por %p111, %p112
      %p114 = scmp.ne.s32.totalorder %s100, %s101
      %p115 = scmp.eq.s32.totalorder %s18, 1
      %p116 = por %p114, %p115
      %p118 = scmp.ne.s32.totalorder %s101, %s117
      %p119 = scmp.eq.s32.totalorder %s18, 0
      %p120 = por %p118, %p119
      %s121 = ssub.s32 %s20, %s34
      %s122 = ssub.s32 %s19, %s38
      %s123 = sor.u32 %s121, %s122
      %p124 = scmp.eq.s32.totalorder %s123, 0
      %s126 = sadd.s32 %s125, 1
      %s127 = scalar_select %p124, %s125, %s126
      %p130 = pneg %p124
      %p131 = scmp.eq.s32.totalorder %s12, 1
      %p132 = por %p130, %p131
      %p133 = scmp.ne.s32.totalorder %s125, %s128
      %p134 = scmp.eq.s32.totalorder %s12, 0
      %p135 = por %p133, %p134
      %p136 = scmp.ne.s32.totalorder %s125, %s128
      %p137 = scmp.eq.s32.totalorder %s17, 1
      %p138 = por %p136, %p137
      %p139 = scmp.ne.s32.totalorder %s128, %s129
      %p140 = scmp.eq.s32.totalorder %s17, 0
      %p141 = por %p139, %p140
      %p142 = scmp.ne.s32.totalorder %s128, %s129
      %p143 = scmp.eq.s32.totalorder %s18, 1
      %p144 = por %p142, %p143
      %p146 = scmp.ne.s32.totalorder %s129, %s145
      %p147 = scmp.eq.s32.totalorder %s18, 0
      %p148 = por %p146, %p147
      %p149 = scmp.le.s32.totalorder 1, %s12
      %p150 = scmp.lt.s32.totalorder %s12, 3
      %p151 = pnand %p149, %p150
      %p152 = pneg %p151
      // Predicated region
      $region9: #{tpu_custom_call.1} parent=5 // pred_check
        _
      $region10: #{tpu_custom_call.1} parent=5 // pred_check_branch
        %154 = sbr.rel (%p151) target = $region12
      $region11: #{tpu_custom_call.1} parent=5 // pred_region
        %s155 = ssub.s32 %s12, 1
        // Predicated region
        $region13: #{tpu_custom_call.1} parent=11 // pred_check
          %p156 = pneg %p87
        $region14: #{tpu_custom_call.1} parent=11 // pred_check_branch
          %158 = sbr.rel (%p156) target = $region16
        $region15: #{tpu_custom_call.1} parent=11 // pred_region
          %s159 = smul.u32 32, %s24
          %s160 = smul.u32 2, %s22
          %p161 = scmp.lt.s32.totalorder %s159, 31
          %s162 = scalar_select %p161, %s159, 31
          %p163 = scmp.lt.s32.totalorder %s160, 1
          %s164 = scalar_select %p163, %s160, 1
          %s165 = smul.addr %s162, 2
          %s166 = sadd.s32 %s164, %s165
          %s167 = smul.addr %s166, 4
          %s168 = scalar_lea.vmem %s1, %s167
          %s169 = smul.u32 32, %s24
          %s170 = smul.u32 2, %s22
        $region16: #{tpu_custom_call.1} parent=11 // pred_fallthru
          _
        // Predicated region
        $region17: #{tpu_custom_call.1} parent=11 // pred_check
          %p171 = pneg %p113
        $region18: #{tpu_custom_call.1} parent=11 // pred_check_branch
          %173 = sbr.rel (%p171) target = $region20
        $region19: #{tpu_custom_call.1} parent=11 // pred_region
          %s174 = smul.u32 2, %s22
          %p175 = scmp.lt.s32.totalorder %s174, 1
          %s176 = scalar_select %p175, %s174, 1
          %s177 = scalar_lea.vmem %s2, %s176
          %s178 = smul.u32 2, %s22
        $region20: #{tpu_custom_call.1} parent=11 // pred_fallthru
          _
      $region12: #{tpu_custom_call.1} parent=5 // pred_fallthru
        _
      %p179 = scmp.lt.s32.totalorder %s12, 2
      // Predicated region
      $region21: #{tpu_custom_call.1} parent=5 // pred_check
        %p180 = pneg %p179
      $region22: #{tpu_custom_call.1} parent=5 // pred_check_branch
        %182 = sbr.rel (%p180) target = $region24
      $region23: #{tpu_custom_call.1} parent=5 // pred_region
        // Predicated region
        $region25: #{tpu_custom_call.1} parent=23 // pred_check
          %p183 = pneg %p53
        $region26: #{tpu_custom_call.1} parent=23 // pred_check_branch
          %185 = sbr.rel (%p183) target = $region28
        $region27: #{tpu_custom_call.1} parent=23 // pred_region
          %s186 = smul.u32 2, %s21
          %p187 = scmp.lt.s32.totalorder %s20, 1
          %s188 = scalar_select %p187, %s20, 1
          %p189 = scmp.lt.s32.totalorder %s186, 1
          %s190 = scalar_select %p189, %s186, 1
          %s191 = smul.addr %s188, 2
          %s192 = sadd.s32 %s190, %s191
          %s193 = smul.addr %s192, 8
          %s194 = scalar_lea.vmem %s0, %s193
          %s195 = smul.u32 2, %s21
        $region28: #{tpu_custom_call.1} parent=23 // pred_fallthru
          _
      $region24: #{tpu_custom_call.1} parent=5 // pred_fallthru
        _
      %p196 = scmp.le.s32.totalorder 1, %s12
      %p197 = scmp.lt.s32.totalorder %s12, 3
      %p198 = pnand %p196, %p197
      %p199 = pneg %p198
      // Predicated region
      $region29: #{tpu_custom_call.1} parent=5 // pred_check
        _
      $region30: #{tpu_custom_call.1} parent=5 // pred_check_branch
        %201 = sbr.rel (%p198) target = $region32
      $region31: #{tpu_custom_call.1} parent=5 // pred_region
        %s202 = ssub.s32 %s12, 1
        %s203 = smul.u32 2, %s24
        %p204 = scmp.lt.s32.totalorder %s23, 1
        %s205 = scalar_select %p204, %s23, 1
        %p206 = scmp.lt.s32.totalorder %s203, 1
        %s207 = scalar_select %p206, %s203, 1
        %s208 = smul.addr %s205, 2
        %s209 = sadd.s32 %s207, %s208
        %s210 = smul.addr %s209, 8
        %s211 = scalar_lea.vmem %s0, %s210
        %p212 = pneg %p59
        %p213 = pneg %p56
        %s214 = smul.u32 32, %s24
        %s215 = smul.u32 2, %s22
        %p216 = scmp.lt.s32.totalorder %s214, 31
        %s217 = scalar_select %p216, %s214, 31
        %p218 = scmp.lt.s32.totalorder %s215, 1
        %s219 = scalar_select %p218, %s215, 1
        %s220 = smul.addr %s217, 2
        %s221 = sadd.s32 %s219, %s220
        %s222 = smul.addr %s221, 4
        %s223 = scalar_lea.vmem %s1, %s222
        %p224 = pneg %p87
        %p225 = pneg %p84
        %s226 = smul.u32 2, %s22
        %p227 = scmp.lt.s32.totalorder %s226, 1
        %s228 = scalar_select %p227, %s226, 1
        %s229 = scalar_lea.vmem %s2, %s228
        %p230 = pneg %p113
        %p231 = pneg %p110
        %p232 = pneg %p141
        %p233 = pneg %p138
        %s234 = sand.u32 %s128, 1
        %s235 = scalar_lea.sflag [#allocation4], %s234
        %s236 = sand.u32 %s128, 1
        %s237 = smul.addr %s236, 16
        %s238 = scalar_lea.vmem [#allocation3], %s237
        %s239 = smul.u32 2, %s24
        %p240 = scmp.lt.s32.totalorder %s23, 1
        %s241 = scalar_select %p240, %s23, 1
        %p242 = scmp.lt.s32.totalorder %s239, 1
        %s243 = scalar_select %p242, %s239, 1
        %s244 = smul.addr %s241, 2
        %s245 = sadd.s32 %s243, %s244
        %s246 = smul.addr %s245, 8
        %s247 = scalar_lea.vmem %s0, %s246
        %s248 = smul.u32 2, %s24
        %s249 = smul.u32 32, %s24
        %s250 = smul.u32 2, %s22
        %p251 = scmp.lt.s32.totalorder %s249, 31
        %s252 = scalar_select %p251, %s249, 31
        %p253 = scmp.lt.s32.totalorder %s250, 1
        %s254 = scalar_select %p253, %s250, 1
        %s255 = smul.addr %s252, 2
        %s256 = sadd.s32 %s254, %s255
        %s257 = smul.addr %s256, 4
        %s258 = scalar_lea.vmem %s1, %s257
        %s259 = smul.u32 32, %s24
        %s260 = smul.u32 2, %s22
        %s261 = smul.u32 2, %s22
        %p262 = scmp.lt.s32.totalorder %s261, 1
        %s263 = scalar_select %p262, %s261, 1
        %s264 = scalar_lea.vmem %s2, %s263
        %s265 = smul.u32 2, %s22
        %s266 = smul.u32 2, %s22
        %p267 = scmp.eq.s32.totalorder %s24, 0
        // Predicated region
        $region33: #{tpu_custom_call.1} parent=31 // pred_check
          %p268 = pneg %p267
        $region34: #{tpu_custom_call.1} parent=31 // pred_check_branch
          %270 = sbr.rel (%p268) target = $region36
        $region35: #{tpu_custom_call.1} parent=31 // pred_region
          %271 = vst [vmem:[#allocation2] sm:$0xff] 0.0
          %272 = vst [vmem:[#allocation2 + $0x8] sm:$0xff] 0.0
        $region36: #{tpu_custom_call.1} parent=31 // pred_fallthru
          _
        %v273 = vld [vmem:[#allocation2] sm:$0xff]
        %v274 = vld [vmem:[#allocation2 + $0x8] sm:$0xff]
        %v275 = vld [vmem:[%s247] sm:$0xff]
        %v276 = vld [vmem:[%s247 + $0x8] sm:$0xff]
        %v277 = vpack.c.bf16 %v275, %v275
        %v278 = vpack.c.bf16 %v276, %v276
        %v279 = vld [vmem:[%s258] sm:$0xff]
        %v280 = vld [vmem:[%s258 + $0x8] sm:$0xff]
        %v281 = vld [vmem:[%s258 + $0x10] sm:$0xff]
        %v282 = vld [vmem:[%s258 + $0x18] sm:$0xff]
        %v283 = vld [vmem:[%s258 + $0x20] sm:$0xff]
        %v284 = vld [vmem:[%s258 + $0x28] sm:$0xff]
        %v285 = vld [vmem:[%s258 + $0x30] sm:$0xff]
        %v286 = vld [vmem:[%s258 + $0x38] sm:$0xff]
        %v287 = vld [vmem:[%s258 + $0x40] sm:$0xff]
        %v288 = vld [vmem:[%s258 + $0x48] sm:$0xff]
        %v289 = vld [vmem:[%s258 + $0x50] sm:$0xff]
        %v290 = vld [vmem:[%s258 + $0x58] sm:$0xff]
        %v291 = vld [vmem:[%s258 + $0x60] sm:$0xff]
        %v292 = vld [vmem:[%s258 + $0x68] sm:$0xff]
        %v293 = vld [vmem:[%s258 + $0x70] sm:$0xff]
        %v294 = vld [vmem:[%s258 + $0x78] sm:$0xff]
        %v295 = vld [vmem:[%s258 + $0x80] sm:$0xff]
        %v296 = vld [vmem:[%s258 + $0x88] sm:$0xff]
        %v297 = vld [vmem:[%s258 + $0x90] sm:$0xff]
        %v298 = vld [vmem:[%s258 + $0x98] sm:$0xff]
        %v299 = vld [vmem:[%s258 + $0xa0] sm:$0xff]
        %v300 = vld [vmem:[%s258 + $0xa8] sm:$0xff]
        %v301 = vld [vmem:[%s258 + $0xb0] sm:$0xff]
        %v302 = vld [vmem:[%s258 + $0xb8] sm:$0xff]
        %v303 = vld [vmem:[%s258 + $0xc0] sm:$0xff]
        %v304 = vld [vmem:[%s258 + $0xc8] sm:$0xff]
        %v305 = vld [vmem:[%s258 + $0xd0] sm:$0xff]
        %v306 = vld [vmem:[%s258 + $0xd8] sm:$0xff]
        %v307 = vld [vmem:[%s258 + $0xe0] sm:$0xff]
        %v308 = vld [vmem:[%s258 + $0xe8] sm:$0xff]
        %v309 = vld [vmem:[%s258 + $0xf0] sm:$0xff]
        %v310 = vld [vmem:[%s258 + $0xf8] sm:$0xff]
        %v343 = vunpack.c.l.b16 %v279
        %v344 = vunpack.c.h.b16 %v279
        %v345 = vunpack.c.l.b16 %v280
        %v346 = vunpack.c.h.b16 %v280
        %v347 = vunpack.c.l.b16 %v281
        %v348 = vunpack.c.h.b16 %v281
        %v349 = vunpack.c.l.b16 %v282
        %v350 = vunpack.c.h.b16 %v282
        %v351 = vunpack.c.l.b16 %v283
        %v352 = vunpack.c.h.b16 %v283
        %v353 = vunpack.c.l.b16 %v284
        %v354 = vunpack.c.h.b16 %v284
        %v355 = vunpack.c.l.b16 %v285
        %v356 = vunpack.c.h.b16 %v285
        %v357 = vunpack.c.l.b16 %v286
        %v358 = vunpack.c.h.b16 %v286
        %v359 = vunpack.c.l.b16 %v287
        %v360 = vunpack.c.h.b16 %v287
        %v361 = vunpack.c.l.b16 %v288
        %v362 = vunpack.c.h.b16 %v288
        %v363 = vunpack.c.l.b16 %v289
        %v364 = vunpack.c.h.b16 %v289
        %v365 = vunpack.c.l.b16 %v290
        %v366 = vunpack.c.h.b16 %v290
        %v367 = vunpack.c.l.b16 %v291
        %v368 = vunpack.c.h.b16 %v291
        %v369 = vunpack.c.l.b16 %v292
        %v370 = vunpack.c.h.b16 %v292
        %v371 = vunpack.c.l.b16 %v293
        %v372 = vunpack.c.h.b16 %v293
        %v373 = vunpack.c.l.b16 %v294
        %v374 = vunpack.c.h.b16 %v294
        %v375 = vunpack.c.l.b16 %v295
        %v376 = vunpack.c.h.b16 %v295
        %v377 = vunpack.c.l.b16 %v296
        %v378 = vunpack.c.h.b16 %v296
        %v379 = vunpack.c.l.b16 %v297
        %v380 = vunpack.c.h.b16 %v297
        %v381 = vunpack.c.l.b16 %v298
        %v382 = vunpack.c.h.b16 %v298
        %v383 = vunpack.c.l.b16 %v299
        %v384 = vunpack.c.h.b16 %v299
        %v385 = vunpack.c.l.b16 %v300
        %v386 = vunpack.c.h.b16 %v300
        %v387 = vunpack.c.l.b16 %v301
        %v388 = vunpack.c.h.b16 %v301
        %v389 = vunpack.c.l.b16 %v302
        %v390 = vunpack.c.h.b16 %v302
        %v391 = vunpack.c.l.b16 %v303
        %v392 = vunpack.c.h.b16 %v303
        %v393 = vunpack.c.l.b16 %v304
        %v394 = vunpack.c.h.b16 %v304
        %v395 = vunpack.c.l.b16 %v305
        %v396 = vunpack.c.h.b16 %v305
        %v397 = vunpack.c.l.b16 %v306
        %v398 = vunpack.c.h.b16 %v306
        %v399 = vunpack.c.l.b16 %v307
        %v400 = vunpack.c.h.b16 %v307
        %v401 = vunpack.c.l.b16 %v308
        %v402 = vunpack.c.h.b16 %v308
        %v403 = vunpack.c.l.b16 %v309
        %v404 = vunpack.c.h.b16 %v309
        %v405 = vunpack.c.l.b16 %v310
        %v406 = vunpack.c.h.b16 %v310
        %v407 = vpack.c.b16 %v345, %v343
        %v408 = vpack.c.b16 %v346, %v344
        %v409 = vpack.c.b16 %v349, %v347
        %v410 = vpack.c.b16 %v350, %v348
        %v411 = vpack.c.b16 %v353, %v351
        %v412 = vpack.c.b16 %v354, %v352
        %v413 = vpack.c.b16 %v357, %v355
        %v414 = vpack.c.b16 %v358, %v356
        %v415 = vpack.c.b16 %v361, %v359
        %v416 = vpack.c.b16 %v362, %v360
        %v417 = vpack.c.b16 %v365, %v363
        %v418 = vpack.c.b16 %v366, %v364
        %v419 = vpack.c.b16 %v369, %v367
        %v420 = vpack.c.b16 %v370, %v368
        %v421 = vpack.c.b16 %v373, %v371
        %v422 = vpack.c.b16 %v374, %v372
        %v423 = vpack.c.b16 %v377, %v375
        %v424 = vpack.c.b16 %v378, %v376
        %v425 = vpack.c.b16 %v381, %v379
        %v426 = vpack.c.b16 %v382, %v380
        %v427 = vpack.c.b16 %v385, %v383
        %v428 = vpack.c.b16 %v386, %v384
        %v429 = vpack.c.b16 %v389, %v387
        %v430 = vpack.c.b16 %v390, %v388
        %v431 = vpack.c.b16 %v393, %v391
        %v432 = vpack.c.b16 %v394, %v392
        %v433 = vpack.c.b16 %v397, %v395
        %v434 = vpack.c.b16 %v398, %v396
        %v435 = vpack.c.b16 %v401, %v399
        %v436 = vpack.c.b16 %v402, %v400
        %v437 = vpack.c.b16 %v405, %v403
        %v438 = vpack.c.b16 %v406, %v404
        %471 = vmatprep.subr.bf16.mxu0 %v408
        %472 = vmatpush1.bf16.msra.mxu0 %v407
        %473 = vmatprep.subr.bf16.mxu0 %v410
        %474 = vmatpush1.bf16.msra.mxu0 %v409
        %475 = vmatprep.subr.bf16.mxu0 %v412
        %476 = vmatpush1.bf16.msra.mxu0 %v411
        %477 = vmatprep.subr.bf16.mxu0 %v414
        %478 = vmatpush1.bf16.msra.mxu0 %v413
        %479 = vmatprep.subr.bf16.mxu0 %v416
        %480 = vmatpush1.bf16.msra.mxu0 %v415
        %481 = vmatprep.subr.bf16.mxu0 %v418
        %482 = vmatpush1.bf16.msra.mxu0 %v417
        %483 = vmatprep.subr.bf16.mxu0 %v420
        %484 = vmatpush1.bf16.msra.mxu0 %v419
        %485 = vmatprep.subr.bf16.mxu0 %v422
        %486 = vmatpush1.bf16.msra.mxu0 %v421
        %487 = vmatprep.subr.bf16.mxu0 %v424
        %488 = vmatpush1.bf16.msra.mxu0 %v423
        %489 = vmatprep.subr.bf16.mxu0 %v426
        %490 = vmatpush1.bf16.msra.mxu0 %v425
        %491 = vmatprep.subr.bf16.mxu0 %v428
        %492 = vmatpush1.bf16.msra.mxu0 %v427
        %493 = vmatprep.subr.bf16.mxu0 %v430
        %494 = vmatpush1.bf16.msra.mxu0 %v429
        %495 = vmatprep.subr.bf16.mxu0 %v432
        %496 = vmatpush1.bf16.msra.mxu0 %v431
        %497 = vmatprep.subr.bf16.mxu0 %v434
        %498 = vmatpush1.bf16.msra.mxu0 %v433
        %499 = vmatprep.subr.bf16.mxu0 %v436
        %500 = vmatpush1.bf16.msra.mxu0 %v435
        %501 = vmatprep.subr.bf16.mxu0 %v438
        %502 = vmatpush1.bf16.msra.mxu0 %v437
        %503 = vmatprep.mubr.bf16.mxu0 %v278
        %504 = vmatmul.mubr.bf16.gmra.mrb[0].mxu0 %v277
        %v505 = vpop.f32.mrb[0].mxu0
        %v506 = vadd.f32 0.0, %v505
        %v507 = vpop.f32.mrb[0].mxu0
        %v508 = vadd.f32 0.0, %v507
        %v509 = vpop.f32.mrb[0].mxu0
        %v510 = vpop.f32.mrb[0].mxu0
        %511 = vdwg.mxu0
        %v512 = vadd.f32 %v273, %v506
        %v513 = vadd.f32 %v274, %v508
        %514 = vst [vmem:[#allocation2] sm:$0xff] %v512
        %515 = vst [vmem:[#allocation2 + $0x8] sm:$0xff] %v513
        // Predicated region
        $region37: #{tpu_custom_call.1} parent=31 // pred_check
          %p516 = pneg %p267
        $region38: #{tpu_custom_call.1} parent=31 // pred_check_branch
          %518 = sbr.rel (%p516) target = $region40
        $region39: #{tpu_custom_call.1} parent=31 // pred_region
          %v519 = vld [vmem:[#allocation2] sm:$0xff]
          %v520 = vld [vmem:[#allocation2 + $0x8] sm:$0xff]
          %v521 = vld [vmem:[%s264] sm:$0x3]
          %v523 = vlaneseq
          %v524 = vshrl.u32 %v523, 7
          %v525 = vsub.s32 0, %v524
          %v526 = vrot.slane %v521, %v525
          %v527 = vlaneseq
          %v528 = vshrl.u32 %v527, 7
          %v529 = vsub.s32 1, %v528
          %v530 = vrot.slane %v521, %v529
          %v533 = vadd.f32 %v519, %v526
          %v534 = vadd.f32 %v520, %v530
          %v535 = vmul.f32 %v533, 0.5
          %v536 = vmul.f32 %v534, 0.5
          %v537 = vtanh.pop %v535
          %v538 = vtanh.pop %v536
          %v539 = vadd.f32 %v537, 1.0
          %v540 = vadd.f32 %v538, 1.0
          %v541 = vmul.f32 %v539, 0.5
          %v542 = vmul.f32 %v540, 0.5
          %v543 = vmul.f32 %v533, %v541
          %v544 = vmul.f32 %v534, %v542
          %545 = vst [vmem:[%s238] sm:$0xff] %v543
          %546 = vst [vmem:[%s238 + $0x8] sm:$0xff] %v544
        $region40: #{tpu_custom_call.1} parent=31 // pred_fallthru
          _
        %s547 = sand.u32 %s128, 1
        %s548 = scalar_lea.sflag [#allocation4], %s547
        %s549 = sand.u32 %s128, 1
        %s550 = smul.addr %s549, 16
        %s551 = scalar_lea.vmem [#allocation3], %s550
        // Predicated region
        $region41: #{tpu_custom_call.1} parent=31 // pred_check
          %p552 = pneg %p138
        $region42: #{tpu_custom_call.1} parent=31 // pred_check_branch
          %554 = sbr.rel (%p552) target = $region44
        $region43: #{tpu_custom_call.1} parent=31 // pred_region
          %s555 = smul.u32 2, %s22
          %s557 = ssub.s32 256, 256
          %558 = vsyncadd %s548, %s557
          %s559 = smul.addr %s23, 2
          %s560 = sadd.s32 %s555, %s559
          %s561 = smul.addr %s560, 128
          %s562 = scalar_lea.hbm %s3, %s561
          %s564 = sshll.u32 %s551, 4
          %s565 = int_to_ptr.vmem [resolvable:$true] %s564
          %567 = dma.vmem_to_hbm [thread:$0]  %s565, 256, %s562, %s548
        $region44: #{tpu_custom_call.1} parent=31 // pred_fallthru
          _
      $region32: #{tpu_custom_call.1} parent=5 // pred_fallthru
        _
      %p568 = scmp.le.s32.totalorder 2, %s12
      // Predicated region
      $region45: #{tpu_custom_call.1} parent=5 // pred_check
        %p569 = pneg %p568
      $region46: #{tpu_custom_call.1} parent=5 // pred_check_branch
        %571 = sbr.rel (%p569) target = $region48
      $region47: #{tpu_custom_call.1} parent=5 // pred_region
        %s572 = ssub.s32 %s12, 2
        // Predicated region
        $region49: #{tpu_custom_call.1} parent=47 // pred_check
          %p573 = pneg %p144
        $region50: #{tpu_custom_call.1} parent=47 // pred_check_branch
          %575 = sbr.rel (%p573) target = $region52
        $region51: #{tpu_custom_call.1} parent=47 // pred_region
          %s576 = sand.u32 %s129, 1
          %s577 = scalar_lea.sflag [#allocation4], %s576
          %s578 = sand.u32 %s129, 1
          %s579 = smul.addr %s578, 16
          %s580 = scalar_lea.vmem [#allocation3], %s579
          %581 = dma.done %s577, 256
        $region52: #{tpu_custom_call.1} parent=47 // pred_fallthru
          _
      $region48: #{tpu_custom_call.1} parent=5 // pred_fallthru
        _
    $region6: #{tpu_custom_call.1} parent=1 // loop_footer
      %s16 = sadd.s32 1, %s12
    $region7: #{tpu_custom_call.1} parent=1 // loop_footer_branch
      %11 = sbr.rel target = $region3
    $region8: #{tpu_custom_call.1} parent=1 // loop_exit
      _
    %582 = vsyncpa [#allocation4], 1
    %s583 = scalar_lea.sflag [#allocation4], 1
    %584 = vsyncpa %s583, 1

</llo_original>
